<compile_context>
chip_gen: v5e
topology: v5e:2x2
jax: 0.10.0
libtpu: 0.0.40
codegen_flags: <defaults>
</compile_context>

<pallas_src>
import functools

import jax
import jax.numpy as jnp
from jax.experimental import pallas as pl
from jax.experimental.pallas import tpu as pltpu


def _ipow(x, p):
    # static positive-integer power via repeated VPU multiplies (never exp/log on EUP)
    acc = x
    for _ in range(p - 1):
        acc = acc * x
    return acc


def _dice_kernel(p_ref, t_ref, loss_ref, num_acc, den_acc, *, smooth, p_exp):
    b = pl.program_id(0)          # batch row
    k = pl.program_id(1)          # D tile (innermost, reduction axis)

    @pl.when(k == 0)
    def _():
        num_acc[...] = jnp.zeros_like(num_acc)
        den_acc[...] = jnp.zeros_like(den_acc)

    pred = p_ref[0].astype(jnp.float32)   # (block_rows, 128)
    targ = t_ref[0].astype(jnp.float32)

    # hot loop: pure elementwise VALU work, no cross-lane reductions
    num_acc[...] += pred * targ
    den_acc[...] += _ipow(pred, p_exp) + _ipow(targ, p_exp)

    @pl.when(k == pl.num_programs(1) - 1)
    def _():
        # single deferred XLU reduction per batch row (epilogue only)
        num = jnp.sum(num_acc[...]) + smooth
        den = jnp.sum(den_acc[...]) + smooth
        loss_ref[b] = 1.0 - num / den


def _sublane_multiple(dtype):
    # minimum sublane multiple for dense tiles of this dtype
    return {4: 8, 2: 16, 1: 32}.get(jnp.dtype(dtype).itemsize, 8)


def _choose_layout(d, sub, max_block_rows):
    """Return (d_padded, block_rows): d_padded % 128 == 0 and
    block_rows divides d_padded // 128 (full-extent or a multiple of `sub`)."""
    r_total = -(-d // 128)                       # ceil(d / 128)
    if r_total <= max_block_rows:
        # whole row in a single full-extent D tile (no sublane-multiple constraint)
        return r_total * 128, r_total
    # tile the D axis: rows-per-tile must be a multiple of the sublane packing
    r_aligned = -(-r_total // sub) * sub
    best = sub
    for br in range(sub, max_block_rows + 1, sub):
        if r_aligned % br == 0:
            best = br
    if best < 64:
        # no reasonably large divisor: round D up so a big dense tile divides evenly
        # (zero padding contributes 0 to both sums, and is cheaper than tiny tiles)
        best = min(max_block_rows, 256)
        r_aligned = -(-r_total // best) * best
    return r_aligned * 128, best


def binary_dice_loss(predict, target, *, smooth=1.0, p=2, reduction='mean',
                     max_block_rows=512):
    """Pallas implementation of BinaryDiceLoss.forward (ohem_ratio=None path).

    Inputs may be any float dtype (feed bf16 straight in to halve HBM traffic);
    accumulation is always float32."""
    assert predict.shape[0] == target.shape[0], "predict & target batch size don't match"
    assert isinstance(p, int) and p >= 1, "p must be a static positive integer"
    n = predict.shape[0]
    pred2d = predict.reshape(n, -1)
    targ2d = target.reshape(n, -1)
    d = pred2d.shape[1]

    sub = max(_sublane_multiple(pred2d.dtype), _sublane_multiple(targ2d.dtype))
    d_pad, block_rows = _choose_layout(d, sub, max_block_rows)
    if d_pad != d:
        # Only hit when D is not 128-aligned (or has no usable tile divisor).
        # Zero padding adds 0 to both sums for integer p >= 1, so it is exact.
        pred2d = jnp.pad(pred2d, ((0, 0), (0, d_pad - d)))
        targ2d = jnp.pad(targ2d, ((0, 0), (0, d_pad - d)))

    r_total = d_pad // 128
    pred3d = pred2d.reshape(n, r_total, 128)   # free reshape (row-major)
    targ3d = targ2d.reshape(n, r_total, 128)

    grid = (n, r_total // block_rows)
    kernel = functools.partial(_dice_kernel, smooth=float(smooth), p_exp=p)

    bytes_accessed = (pred3d.size * jnp.dtype(pred3d.dtype).itemsize
                      + targ3d.size * jnp.dtype(targ3d.dtype).itemsize
                      + n * 4)
    cost = pl.CostEstimate(flops=(2 * p + 2) * n * d_pad,
                           transcendentals=0,
                           bytes_accessed=bytes_accessed)

    per_batch = pl.pallas_call(
        kernel,
        out_shape=jax.ShapeDtypeStruct((n,), jnp.float32),
        grid_spec=pltpu.PrefetchScalarGridSpec(
            num_scalar_prefetch=0,
            grid=grid,
            in_specs=[
                pl.BlockSpec((1, block_rows, 128), lambda b, k: (b, k, 0)),
                pl.BlockSpec((1, block_rows, 128), lambda b, k: (b, k, 0)),
            ],
            out_specs=pl.BlockSpec(memory_space=pltpu.MemorySpace.SMEM),
            scratch_shapes=[
                pltpu.VMEM((block_rows, 128), jnp.float32),
                pltpu.VMEM((block_rows, 128), jnp.float32),
            ],
        ),
        compiler_params=pltpu.CompilerParams(
            # D (reduction) axis innermost; both axes sequential so the shared
            # SMEM per-batch output is race-free.
            # TODO(synk): on v7x (2 TCs) split the D axis across cores for large D.
            dimension_semantics=("arbitrary", "arbitrary"),
        ),
        cost_estimate=cost,
    )(pred3d, targ3d)

    if reduction == 'mean':
        return jnp.mean(per_batch)
    elif reduction == 'sum':
        return jnp.sum(per_batch)
    elif reduction == 'none':
        return per_batch
    else:
        raise Exception('Unexpected reduction {}'.format(reduction))


def _reference(predict, target, smooth=1.0, p=2):
    n = predict.shape[0]
    pr = predict.reshape(n, -1).astype(jnp.float32)
    tg = target.reshape(n, -1).astype(jnp.float32)
    num = jnp.sum(pr * tg, axis=1) + smooth
    den = jnp.sum(pr ** p + tg ** p, axis=1) + smooth
    return jnp.mean(1.0 - num / den)


if __name__ == "__main__":
    key = jax.random.PRNGKey(0)
    k1, k2 = jax.random.split(key)
    # predict: sigmoid-like probabilities, target: binary mask, NCHW layout [2, 4, 16, 16]
    predict = jax.nn.sigmoid(jax.random.normal(k1, (2, 4, 16, 16), dtype=jnp.float32))
    target = (jax.random.uniform(k2, (2, 4, 16, 16)) > 0.5).astype(jnp.float32)

    loss = jax.block_until_ready(binary_dice_loss(predict, target))
    ref = jax.block_until_ready(_reference(predict, target))
    assert jnp.allclose(loss, ref, rtol=1e-5, atol=1e-6), (loss, ref)

    # TODO(synk): ohem_ratio branch (torch.topk-based online hard example mining) not
    # implemented; module defaults to ohem_ratio=None so forward semantics match.
    print("KERNEL_OK")
</pallas_src>

<mosaic_0001>
module attributes {stable_mosaic.version = 11 : i64} {
  func.func @_dice_kernel(%arg0: i32, %arg1: i32, %arg2: memref<1x8x128xf32, #tpu.memory_space<vmem>>, %arg3: memref<1x8x128xf32, #tpu.memory_space<vmem>>, %arg4: memref<2xf32, #tpu.memory_space<smem>>, %arg5: memref<8x128xf32, #tpu.memory_space<vmem>>, %arg6: memref<8x128xf32, #tpu.memory_space<vmem>>) attributes {dimension_semantics = [#tpu.dimension_semantics<arbitrary>, #tpu.dimension_semantics<arbitrary>], iteration_bounds = array<i64: 2, 1>, scalar_prefetch = 0 : i64, scratch_operands = 2 : i64, tpu.core_type = #tpu.core_type<tc>, window_params = [{transform_indices = @transform_0, window_bounds = array<i64: 1, 8, 128>}, {transform_indices = @transform_1, window_bounds = array<i64: 1, 8, 128>}, {transform_indices = @transform_2, window_bounds = array<i64: 2>}]} {
    %c0_i32 = arith.constant 0 : i32
    %0 = arith.cmpi eq, %arg1, %c0_i32 : i32
    %1 = arith.extui %0 : i1 to i32
    %c0_i32_0 = arith.constant 0 : i32
    %2 = arith.cmpi ne, %1, %c0_i32_0 : i32
    scf.if %2 {
      %cst = arith.constant 0.000000e+00 : f32
      %20 = vector.broadcast %cst : f32 to vector<8x128xf32>
      %c0_16 = arith.constant 0 : index
      %c0_17 = arith.constant 0 : index
      %21 = vector.load %arg5[%c0_16, %c0_17] : memref<8x128xf32, #tpu.memory_space<vmem>>, vector<8x128xf32>
      tpu.vector_store %arg5[%c0_16, %c0_17], %20 {strides = array<i32>} : memref<8x128xf32, #tpu.memory_space<vmem>>, vector<8x128xf32>,
      %cst_18 = arith.constant 0.000000e+00 : f32
      %22 = vector.broadcast %cst_18 : f32 to vector<8x128xf32>
      %c0_19 = arith.constant 0 : index
      %c0_20 = arith.constant 0 : index
      %23 = vector.load %arg6[%c0_19, %c0_20] : memref<8x128xf32, #tpu.memory_space<vmem>>, vector<8x128xf32>
      tpu.vector_store %arg6[%c0_19, %c0_20], %22 {strides = array<i32>} : memref<8x128xf32, #tpu.memory_space<vmem>>, vector<8x128xf32>,
    } else {
    }
    %c0 = arith.constant 0 : index
    %c0_1 = arith.constant 0 : index
    %c0_2 = arith.constant 0 : index
    %3 = vector.load %arg2[%c0, %c0_1, %c0_2] : memref<1x8x128xf32, #tpu.memory_space<vmem>>, vector<1x8x128xf32>
    %4 = vector.shape_cast %3 : vector<1x8x128xf32> to vector<8x128xf32>
    %c0_3 = arith.constant 0 : index
    %c0_4 = arith.constant 0 : index
    %c0_5 = arith.constant 0 : index
    %5 = vector.load %arg3[%c0_3, %c0_4, %c0_5] : memref<1x8x128xf32, #tpu.memory_space<vmem>>, vector<1x8x128xf32>
    %6 = vector.shape_cast %5 : vector<1x8x128xf32> to vector<8x128xf32>
    %c0_6 = arith.constant 0 : index
    %c0_7 = arith.constant 0 : index
    %7 = vector.load %arg5[%c0_6, %c0_7] : memref<8x128xf32, #tpu.memory_space<vmem>>, vector<8x128xf32>
    %8 = arith.mulf %4, %6 : vector<8x128xf32>
    %9 = arith.addf %7, %8 : vector<8x128xf32>
    %c0_8 = arith.constant 0 : index
    %c0_9 = arith.constant 0 : index
    %10 = vector.load %arg5[%c0_8, %c0_9] : memref<8x128xf32, #tpu.memory_space<vmem>>, vector<8x128xf32>
    tpu.vector_store %arg5[%c0_8, %c0_9], %9 {strides = array<i32>} : memref<8x128xf32, #tpu.memory_space<vmem>>, vector<8x128xf32>,
    %c0_10 = arith.constant 0 : index
    %c0_11 = arith.constant 0 : index
    %11 = vector.load %arg6[%c0_10, %c0_11] : memref<8x128xf32, #tpu.memory_space<vmem>>, vector<8x128xf32>
    %12 = arith.mulf %4, %4 : vector<8x128xf32>
    %13 = arith.mulf %6, %6 : vector<8x128xf32>
    %14 = arith.addf %12, %13 : vector<8x128xf32>
    %15 = arith.addf %11, %14 : vector<8x128xf32>
    %c0_12 = arith.constant 0 : index
    %c0_13 = arith.constant 0 : index
    %16 = vector.load %arg6[%c0_12, %c0_13] : memref<8x128xf32, #tpu.memory_space<vmem>>, vector<8x128xf32>
    tpu.vector_store %arg6[%c0_12, %c0_13], %15 {strides = array<i32>} : memref<8x128xf32, #tpu.memory_space<vmem>>, vector<8x128xf32>,
    %c0_i32_14 = arith.constant 0 : i32
    %17 = arith.cmpi eq, %arg1, %c0_i32_14 : i32
    %18 = arith.extui %17 : i1 to i32
    %c0_i32_15 = arith.constant 0 : i32
    %19 = arith.cmpi ne, %18, %c0_i32_15 : i32
    scf.if %19 {
      %c0_16 = arith.constant 0 : index
      %c0_17 = arith.constant 0 : index
      %20 = vector.load %arg5[%c0_16, %c0_17] : memref<8x128xf32, #tpu.memory_space<vmem>>, vector<8x128xf32>
      %21 = vector.shape_cast %20 : vector<8x128xf32> to vector<1x8x128xf32>
      %cst = arith.constant dense<0.000000e+00> : vector<1xf32>
      %22 = vector.multi_reduction <add>, %21, %cst [1, 2] : vector<1x8x128xf32> to vector<1xf32>
      %23 = vector.shape_cast %22 : vector<1xf32> to vector<1x1x1xf32>
      %24 = vector.extract %23[0, 0, 0] : f32 from vector<1x1x1xf32>
      %cst_18 = arith.constant 1.000000e+00 : f32
      %25 = arith.addf %24, %cst_18 : f32
      %c0_19 = arith.constant 0 : index
      %c0_20 = arith.constant 0 : index
      %26 = vector.load %arg6[%c0_19, %c0_20] : memref<8x128xf32, #tpu.memory_space<vmem>>, vector<8x128xf32>
      %27 = vector.shape_cast %26 : vector<8x128xf32> to vector<1x8x128xf32>
      %cst_21 = arith.constant dense<0.000000e+00> : vector<1xf32>
      %28 = vector.multi_reduction <add>, %27, %cst_21 [1, 2] : vector<1x8x128xf32> to vector<1xf32>
      %29 = vector.shape_cast %28 : vector<1xf32> to vector<1x1x1xf32>
      %30 = vector.extract %29[0, 0, 0] : f32 from vector<1x1x1xf32>
      %cst_22 = arith.constant 1.000000e+00 : f32
      %31 = arith.addf %30, %cst_22 : f32
      %32 = arith.divf %25, %31 : f32
      %cst_23 = arith.constant 1.000000e+00 : f32
      %33 = arith.subf %cst_23, %32 : f32
      %34 = arith.index_cast %arg0 : i32 to index
      %35 = memref.load %arg4[%34] : memref<2xf32, #tpu.memory_space<smem>>
      memref.store %33, %arg4[%34] : memref<2xf32, #tpu.memory_space<smem>>
    } else {
    }
    return
  }
  func.func @transform_0(%arg0: i32, %arg1: i32) -> (i32, i32, i32) {
    %c0_i32 = arith.constant 0 : i32
    %c0_i32_0 = arith.constant 0 : i32
    return %arg0, %arg1, %c0_i32 : i32, i32, i32
  }
  func.func @transform_1(%arg0: i32, %arg1: i32) -> (i32, i32, i32) {
    %c0_i32 = arith.constant 0 : i32
    %c0_i32_0 = arith.constant 0 : i32
    return %arg0, %arg1, %c0_i32 : i32, i32, i32
  }
  func.func @transform_2(%arg0: i32, %arg1: i32) -> i32 {
    %c0_i32 = arith.constant 0 : i32
    %c0_i32_0 = arith.constant 0 : i32
    return %c0_i32 : i32
  }
}

</mosaic_0001>

<llo_original>
// kernel: tpu_custom_call.1
$region0: #{tpu_custom_call.1}
  #allocation0 [shape = 'u32[]', space=smem, size = 0x4, offset = 0x4, fixed_abs, tag = 'smem constant byte address 0x4 - core index']
  #allocation1 [shape = 'u32[72,128]{1,0:T(1,128)}', space=vmem, size = 0x9000, scoped, tag = 'internal scratch']
  #allocation2 [shape = 'f32[8,128]{1,0:T(8,128)}', space=vmem, size = 0x1000, scoped, tag = 'scratch operand']
  #allocation3 [shape = 'f32[8,128]{1,0:T(8,128)}', space=vmem, size = 0x1000, scoped, tag = 'scratch operand']
  %s0 = inlined_call_operand.hbm [shape: f32[2,8,128], index: 0, kind: input, shape index: {}]
  %s1 = inlined_call_operand.hbm [shape: f32[2,8,128], index: 1, kind: input, shape index: {}]
  %s2 = inlined_call_operand.hbm [shape: f32[2], index: 2, kind: output, shape index: {}]
  %s3 = sld [smem:[#allocation0]]
  $region57: #{tpu_custom_call.1} parent=0
    _
  %s5 = ssub.s32 1, %s3
  %s6 = scalar_select 0, %s5, %s3
  $region1: #{tpu_custom_call.1} parent=0
    #allocation4 [shape = 'u8[8192]{0}', space=vmem, size = 0x2000, scoped, tag = 'input window, operand 0']
    #allocation5 [shape = 's32[2]{0}', space=sflag, size = 0x8, scoped, tag = 'scoped memory for tpu_custom_call.1']
    #allocation6 [shape = 's32[2]{0}', space=sflag, size = 0x8, scoped, tag = 'scoped memory for tpu_custom_call.1']
    #allocation7 [shape = 'u8[8192]{0}', space=vmem, size = 0x2000, scoped, tag = 'input window, operand 1']
    #allocation8 [shape = 's32[2]{0}', space=sflag, size = 0x8, scoped, tag = 'scoped memory for tpu_custom_call.1']
    #allocation9 [shape = 'u8[512]{0}', space=smem, size = 0x200, scoped, tag = 'output window, operand 0, single buffered']
    %7 = vsyncpa [#allocation5], 0
    %s8 = scalar_lea.sflag [#allocation5], 1
    %9 = vsyncpa %s8, 0
    %10 = vsyncpa [#allocation8], 0
    %s11 = scalar_lea.sflag [#allocation8], 1
    %12 = vsyncpa %s11, 0
    %13 = vsyncpa [#allocation6], 0
    loop: start=0, step=1, limit=4
    $region2: #{tpu_custom_call.1} parent=1 // loop_pre_header
      _
    $region3: #{tpu_custom_call.1} parent=1 // loop_header
      %s15 = sphi 0, %s19
      %p16 = scmp.ge.s32.totalorder %s15, 4
      %s22 = sphi 0, %s34
      %s23 = sphi 0, %s30
      %s24 = sphi 0, %s22
      %s25 = sphi 0, %s23
      %s26 = sphi 0, %s24
      %s27 = sphi 0, %s25
      %s39 = sphi 0, %s41
      %s42 = sphi 0, %s39
      %s43 = sphi 0, %s42
      %s59 = sphi 0, %s43
      %s67 = sphi 0, %s69
      %s70 = sphi 0, %s67
      %s71 = sphi 0, %s70
      %s87 = sphi 0, %s71
      %s91 = sphi 0, %s91
      %s93 = sphi 0, %s91
      %s94 = sphi 0, %s93
      %s108 = sphi 0, %s94
    $region4: #{tpu_custom_call.1} parent=1 // loop_header_branch
      %18 = sbr.rel (%p16) target = $region8
    $region5: #{tpu_custom_call.1} parent=1 // loop_body
      %s20 = ssub.s32 %s15, 1
      %s21 = ssub.s32 %s15, 2
      %s28 = sadd.s32 1, %s23
      %p29 = scmp.ge.s32.totalorder %s28, 1
      %s30 = scalar_select %p29, 0, %s28
      %s31 = sadd.s32 1, %s22
      %s32 = scalar_select %p29, %s31, %s22
      %p33 = scmp.ge.s32.totalorder %s32, 2
      %s34 = scalar_select %p33, 0, %s32
      %s35 = ssub.s32 %s22, %s34
      %s36 = ssub.s32 %s23, %s30
      %s37 = sor.u32 %s35, %s36
      %p38 = scmp.eq.s32.totalorder %s37, 0
      %s40 = sadd.s32 %s39, 1
      %s41 = scalar_select %p38, %s39, %s40
      %p44 = pneg %p38
      %p45 = scmp.eq.s32.totalorder %s15, 1
      %p46 = por %p44, %p45
      %p47 = scmp.ne.s32.totalorder %s39, %s42
      %p48 = scmp.eq.s32.totalorder %s15, 0
      %p49 = por %p47, %p48
      %p50 = scmp.ne.s32.totalorder %s39, %s42
      %p51 = scmp.eq.s32.totalorder %s20, 1
      %p52 = por %p50, %p51
      %p53 = scmp.ne.s32.totalorder %s42, %s43
      %p54 = scmp.eq.s32.totalorder %s20, 0
      %p55 = por %p53, %p54
      %p56 = scmp.ne.s32.totalorder %s42, %s43
      %p57 = scmp.eq.s32.totalorder %s21, 1
      %p58 = por %p56, %p57
      %p60 = scmp.ne.s32.totalorder %s43, %s59
      %p61 = scmp.eq.s32.totalorder %s21, 0
      %p62 = por %p60, %p61
      %s63 = ssub.s32 %s22, %s34
      %s64 = ssub.s32 %s23, %s30
      %s65 = sor.u32 %s63, %s64
      %p66 = scmp.eq.s32.totalorder %s65, 0
      %s68 = sadd.s32 %s67, 1
      %s69 = scalar_select %p66, %s67, %s68
      %p72 = pneg %p66
      %p73 = scmp.eq.s32.totalorder %s15, 1
      %p74 = por %p72, %p73
      %p75 = scmp.ne.s32.totalorder %s67, %s70
      %p76 = scmp.eq.s32.totalorder %s15, 0
      %p77 = por %p75, %p76
      %p78 = scmp.ne.s32.totalorder %s67, %s70
      %p79 = scmp.eq.s32.totalorder %s20, 1
      %p80 = por %p78, %p79
      %p81 = scmp.ne.s32.totalorder %s70, %s71
      %p82 = scmp.eq.s32.totalorder %s20, 0
      %p83 = por %p81, %p82
      %p84 = scmp.ne.s32.totalorder %s70, %s71
      %p85 = scmp.eq.s32.totalorder %s21, 1
      %p86 = por %p84, %p85
      %p88 = scmp.ne.s32.totalorder %s71, %s87
      %p89 = scmp.eq.s32.totalorder %s21, 0
      %p90 = por %p88, %p89
      %s92 = sadd.s32 %s91, 1
      %p95 = scmp.eq.s32.totalorder %s15, 1
      %p96 = scmp.ne.s32.totalorder %s91, %s93
      %p97 = scmp.eq.s32.totalorder %s15, 0
      %p98 = por %p96, %p97
      %p99 = scmp.ne.s32.totalorder %s91, %s93
      %p100 = scmp.eq.s32.totalorder %s20, 1
      %p101 = por %p99, %p100
      %p102 = scmp.ne.s32.totalorder %s93, %s94
      %p103 = scmp.eq.s32.totalorder %s20, 0
      %p104 = por %p102, %p103
      %p105 = scmp.ne.s32.totalorder %s93, %s94
      %p106 = scmp.eq.s32.totalorder %s21, 1
      %p107 = por %p105, %p106
      %p109 = scmp.ne.s32.totalorder %s94, %s108
      %p110 = scmp.eq.s32.totalorder %s21, 0
      %p111 = por %p109, %p110
      %p112 = scmp.le.s32.totalorder 1, %s15
      %p113 = scmp.lt.s32.totalorder %s15, 3
      %p114 = pnand %p112, %p113
      %p115 = pneg %p114
      // Predicated region
      $region9: #{tpu_custom_call.1} parent=5 // pred_check
        _
      $region10: #{tpu_custom_call.1} parent=5 // pred_check_branch
        %117 = sbr.rel (%p114) target = $region12
      $region11: #{tpu_custom_call.1} parent=5 // pred_region
        %s118 = ssub.s32 %s15, 1
      $region12: #{tpu_custom_call.1} parent=5 // pred_fallthru
        _
      %p119 = scmp.lt.s32.totalorder %s15, 2
      // Predicated region
      $region13: #{tpu_custom_call.1} parent=5 // pred_check
        %p120 = pneg %p119
      $region14: #{tpu_custom_call.1} parent=5 // pred_check_branch
        %122 = sbr.rel (%p120) target = $region16
      $region15: #{tpu_custom_call.1} parent=5 // pred_region
        // Predicated region
        $region17: #{tpu_custom_call.1} parent=15 // pred_check
          %p123 = pneg %p49
        $region18: #{tpu_custom_call.1} parent=15 // pred_check_branch
          %125 = sbr.rel (%p123) target = $region20
        $region19: #{tpu_custom_call.1} parent=15 // pred_region
          %s126 = sand.u32 %s39, 1
          %s127 = scalar_lea.sflag [#allocation5], %s126
          %s128 = sand.u32 %s39, 1
          %s129 = smul.addr %s128, 8
          %s130 = scalar_lea.vmem [#allocation4], %s129
          %132 = vsyncadd %s127, 0
          %s133 = sadd.s32 %s23, %s22
          %s134 = smul.addr %s133, 8
          %s135 = scalar_lea.hbm %s0, %s134
          %s137 = sshll.u32 %s135, 4
          %s138 = int_to_ptr.hbm [resolvable:$true] %s137
          %s139 = sshll.u32 %s130, 4
          %s140 = int_to_ptr.vmem [resolvable:$true] %s139
          %142 = dma.hbm_to_vmem [thread:$0]  %s138, 128, %s140, %s127
        $region20: #{tpu_custom_call.1} parent=15 // pred_fallthru
          _
        // Predicated region
        $region21: #{tpu_custom_call.1} parent=15 // pred_check
          %p143 = pneg %p77
        $region22: #{tpu_custom_call.1} parent=15 // pred_check_branch
          %145 = sbr.rel (%p143) target = $region24
        $region23: #{tpu_custom_call.1} parent=15 // pred_region
          %s146 = sand.u32 %s67, 1
          %s147 = scalar_lea.sflag [#allocation8], %s146
          %s148 = sand.u32 %s67, 1
          %s149 = smul.addr %s148, 8
          %s150 = scalar_lea.vmem [#allocation7], %s149
          %152 = vsyncadd %s147, 0
          %s153 = sadd.s32 %s23, %s22
          %s154 = smul.addr %s153, 8
          %s155 = scalar_lea.hbm %s1, %s154
          %s157 = sshll.u32 %s155, 4
          %s158 = int_to_ptr.hbm [resolvable:$true] %s157
          %s159 = sshll.u32 %s150, 4
          %s160 = int_to_ptr.vmem [resolvable:$true] %s159
          %162 = dma.hbm_to_vmem [thread:$0]  %s158, 128, %s160, %s147
        $region24: #{tpu_custom_call.1} parent=15 // pred_fallthru
          _
      $region16: #{tpu_custom_call.1} parent=5 // pred_fallthru
        _
      %p163 = scmp.le.s32.totalorder 1, %s15
      %p164 = scmp.lt.s32.totalorder %s15, 3
      %p165 = pnand %p163, %p164
      %p166 = pneg %p165
      // Predicated region
      $region25: #{tpu_custom_call.1} parent=5 // pred_check
        _
      $region26: #{tpu_custom_call.1} parent=5 // pred_check_branch
        %168 = sbr.rel (%p165) target = $region28
      $region27: #{tpu_custom_call.1} parent=5 // pred_region
        %s169 = ssub.s32 %s15, 1
        %s170 = sand.u32 %s42, 1
        %s171 = scalar_lea.sflag [#allocation5], %s170
        %s172 = sand.u32 %s42, 1
        %s173 = smul.addr %s172, 8
        %s174 = scalar_lea.vmem [#allocation4], %s173
        // Predicated region
        $region29: #{tpu_custom_call.1} parent=27 // pred_check
          %p175 = pneg %p55
        $region30: #{tpu_custom_call.1} parent=27 // pred_check_branch
          %177 = sbr.rel (%p175) target = $region32
        $region31: #{tpu_custom_call.1} parent=27 // pred_region
          %179 = dma.done %s171, 128
        $region32: #{tpu_custom_call.1} parent=27 // pred_fallthru
          _
        %s180 = sand.u32 %s70, 1
        %s181 = scalar_lea.sflag [#allocation8], %s180
        %s182 = sand.u32 %s70, 1
        %s183 = smul.addr %s182, 8
        %s184 = scalar_lea.vmem [#allocation7], %s183
        // Predicated region
        $region33: #{tpu_custom_call.1} parent=27 // pred_check
          %p185 = pneg %p83
        $region34: #{tpu_custom_call.1} parent=27 // pred_check_branch
          %187 = sbr.rel (%p185) target = $region36
        $region35: #{tpu_custom_call.1} parent=27 // pred_region
          %189 = dma.done %s181, 128
        $region36: #{tpu_custom_call.1} parent=27 // pred_fallthru
          _
        %s190 = sand.u32 %s42, 1
        %s191 = scalar_lea.sflag [#allocation5], %s190
        %s192 = sand.u32 %s42, 1
        %s193 = smul.addr %s192, 8
        %s194 = scalar_lea.vmem [#allocation4], %s193
        %p195 = pneg %p55
        %p196 = pneg %p52
        %s197 = sand.u32 %s70, 1
        %s198 = scalar_lea.sflag [#allocation8], %s197
        %s199 = sand.u32 %s70, 1
        %s200 = smul.addr %s199, 8
        %s201 = scalar_lea.vmem [#allocation7], %s200
        %p202 = pneg %p83
        %p203 = pneg %p80
        %p204 = pneg %p104
        %p205 = pneg %p101
        %p206 = scmp.eq.s32.totalorder %s25, 0
        // Predicated region
        $region37: #{tpu_custom_call.1} parent=27 // pred_check
          %p207 = pneg %p206
        $region38: #{tpu_custom_call.1} parent=27 // pred_check_branch
          %209 = sbr.rel (%p207) target = $region40
        $region39: #{tpu_custom_call.1} parent=27 // pred_region
          %210 = vst [vmem:[#allocation2] sm:$0xff] 0.0
          %211 = vst [vmem:[#allocation3] sm:$0xff] 0.0
        $region40: #{tpu_custom_call.1} parent=27 // pred_fallthru
          _
        %v212 = vld [vmem:[%s174] sm:$0xff]
        %v213 = vld [vmem:[%s184] sm:$0xff]
        %v214 = vld [vmem:[#allocation2] sm:$0xff]
        %v215 = vmul.f32 %v212, %v213
        %v216 = vadd.f32 %v214, %v215
        %217 = vst [vmem:[#allocation2] sm:$0xff] %v216
        %v218 = vld [vmem:[#allocation3] sm:$0xff]
        %v219 = vmul.f32 %v212, %v212
        %v220 = vmul.f32 %v213, %v213
        %v221 = vadd.f32 %v219, %v220
        %v222 = vadd.f32 %v218, %v221
        %223 = vst [vmem:[#allocation3] sm:$0xff] %v222
        // Predicated region
        $region41: #{tpu_custom_call.1} parent=27 // pred_check
          %p224 = pneg %p206
        $region42: #{tpu_custom_call.1} parent=27 // pred_check_branch
          %226 = sbr.rel (%p224) target = $region44
        $region43: #{tpu_custom_call.1} parent=27 // pred_region
          %v227 = vld [vmem:[#allocation2] sm:$0xff]
          %228 = vadd.xlane.f32.xlu0 %v227
          %v229 = vpop.xlane.xlu0 %228
          %v230 = vrot.slane %v229, 4
          %v231 = vadd.f32 %v229, %v230
          %v232 = vrot.slane %v231, 2
          %v233 = vadd.f32 %v231, %v232
          %v234 = vrot.slane %v233, 1
          %v235 = vadd.f32 %v233, %v234
          %s236 = vtos %v235
          %s237 = sadd.f32 %s236, 1.0
          %v238 = vld [vmem:[#allocation3] sm:$0xff]
          %239 = vadd.xlane.f32.xlu0 %v238
          %v240 = vpop.xlane.xlu0 %239
          %v241 = vrot.slane %v240, 4
          %v242 = vadd.f32 %v240, %v241
          %v243 = vrot.slane %v242, 2
          %v244 = vadd.f32 %v242, %v243
          %v245 = vrot.slane %v244, 1
          %v246 = vadd.f32 %v244, %v245
          %s247 = vtos %v246
          %s248 = sadd.f32 %s247, 1.0
          %v249 = vstv %s248
          %v250 = vrcp.pop %v249
          %v251 = vmul.f32 %v249, %v250
          %v252 = vsub.f32 1.0, %v251
          %v253 = vmul.f32 %v250, %v252
          %v254 = vadd.f32 %v250, %v253
          %vm255 = vweird.f32 %v249
          %vm256 = vweird.f32 %v250
          %vm257 = vmor %vm255, %vm256
          %v258 = vsel %vm257, %v250, %v254
          %v259 = vand.u32 2147483647, %v249
          %vm260 = vcmp.eq.f32.partialorder %v259, 8.507059e+37
          %v261 = vand.u32 %v249, 2147483648
          %v262 = vor.u32 1.1754944e-38, %v261
          %v263 = vsel %vm260, %v262, %v258
          %s264 = vtos %v263
          %s265 = smul.f32 %s237, %s264
          %s266 = ssub.f32 1.0, %s265
          %s267 = scalar_lea.smem [#allocation9], %s24
          %268 = sst [smem:[%s267]] %s266
        $region44: #{tpu_custom_call.1} parent=27 // pred_fallthru
          _
        // Predicated region
        $region45: #{tpu_custom_call.1} parent=27 // pred_check
          %p269 = pneg %p101
        $region46: #{tpu_custom_call.1} parent=27 // pred_check_branch
          %271 = sbr.rel (%p269) target = $region48
        $region47: #{tpu_custom_call.1} parent=27 // pred_region
          %273 = vsyncadd [#allocation6], 0
          %s275 = sshll.u32 %s2, 4
          %s276 = int_to_ptr.hbm [resolvable:$true] %s275
          %278 = dma.smem_to_hbm [#allocation9], 16, %s276, [#allocation6]
        $region48: #{tpu_custom_call.1} parent=27 // pred_fallthru
          _
        // Predicated region
        $region49: #{tpu_custom_call.1} parent=27 // pred_check
          %p279 = pneg %p101
        $region50: #{tpu_custom_call.1} parent=27 // pred_check_branch
          %281 = sbr.rel (%p279) target = $region52
        $region51: #{tpu_custom_call.1} parent=27 // pred_region
          %283 = dma.done [#allocation6], 16
        $region52: #{tpu_custom_call.1} parent=27 // pred_fallthru
          _
        %284 = sfence
      $region28: #{tpu_custom_call.1} parent=5 // pred_fallthru
        _
      %p285 = scmp.le.s32.totalorder 2, %s15
      // Predicated region
      $region53: #{tpu_custom_call.1} parent=5 // pred_check
        %p286 = pneg %p285
      $region54: #{tpu_custom_call.1} parent=5 // pred_check_branch
        %288 = sbr.rel (%p286) target = $region56
      $region55: #{tpu_custom_call.1} parent=5 // pred_region
        %s289 = ssub.s32 %s15, 2
      $region56: #{tpu_custom_call.1} parent=5 // pred_fallthru
        _
    $region6: #{tpu_custom_call.1} parent=1 // loop_footer
      %s19 = sadd.s32 1, %s15
    $region7: #{tpu_custom_call.1} parent=1 // loop_footer_branch
      %14 = sbr.rel target = $region3
    $region8: #{tpu_custom_call.1} parent=1 // loop_exit
      _
    %290 = vsyncpa [#allocation5], 1
    %s291 = scalar_lea.sflag [#allocation5], 1
    %292 = vsyncpa %s291, 1
    %293 = vsyncpa [#allocation8], 1
    %s294 = scalar_lea.sflag [#allocation8], 1
    %295 = vsyncpa %s294, 1
    %296 = vsyncpa [#allocation6], 1
    %s297 = scalar_lea.sflag [#allocation6], 1
    %298 = vsyncpa %s297, 1

</llo_original>
